<compile_context>
chip_gen: v7x
topology: tpu7x:2x2x1
jax: 0.10.0
libtpu: 0.0.40
codegen_flags: <defaults>
</compile_context>

<pallas_src>
import jax
import jax.numpy as jnp
from jax.experimental import pallas as pl
from jax.experimental.pallas import tpu as pltpu


def _laplace_density_kernel(inv_beta_ref, sdf_ref, out_ref):
    # inv_beta_ref: SMEM scalar-prefetch ref of shape (1,), holds 1/beta.
    inv_beta = inv_beta_ref[0]
    s = sdf_ref[...].astype(jnp.float32)
    # Closed form of 0.5 + 0.5*sign(s)*expm1(-|s|/beta).
    e = 0.5 * jnp.exp(-jnp.abs(s) * inv_beta)
    density = inv_beta * jnp.where(s >= 0.0, e, 1.0 - e)
    out_ref[...] = density.astype(out_ref.dtype)


def laplace_density(sdf, beta_param, beta_min, beta=None, *,
                    lanes=128, tile_rows=4096):
    """Pallas implementation of LaplaceDensity.forward.

    sdf: float array of any shape (typically [num_points, 1]).
    beta_param, beta_min: shape-(1,) parameter arrays (as in the nn.Module).
    beta: optional explicit beta override (python float / scalar / shape-(1,)).
    """
    if beta is None:
        beta = jnp.abs(beta_param) + beta_min          # get_beta()
    inv_beta = (1.0 / jnp.asarray(beta, jnp.float32)).reshape((1,))

    orig_shape = sdf.shape
    orig_dtype = sdf.dtype

    if sdf.size == 0:                                  # guard empty input
        return jnp.zeros(orig_shape, orig_dtype)

    # Keep bf16/f32 in HBM (halves traffic for bf16 callers); upcast in-kernel.
    if orig_dtype in (jnp.dtype(jnp.bfloat16), jnp.dtype(jnp.float32)):
        io_dtype = orig_dtype
    else:
        io_dtype = jnp.float32

    flat = sdf.reshape((-1,)).astype(io_dtype)
    n = flat.shape[0]

    # Lane-dense 2D view [rows, lanes]; pad only a (< lanes)-element remainder.
    pad = (-n) % lanes
    if pad:
        flat = jnp.pad(flat, ((0, pad),))
    rows = (n + pad) // lanes
    x2d = flat.reshape((rows, lanes))

    # Row blocking: big streaming tiles.  When the whole array is smaller than
    # one tile, use the full array as the block (full-dim block satisfies the
    # (8,128) rule).  A ragged last block (rows % tm != 0) is masked by Pallas.
    tm = tile_rows if rows >= tile_rows else rows
    grid = (pl.cdiv(rows, tm),)

    out = pl.pallas_call(
        _laplace_density_kernel,
        out_shape=jax.ShapeDtypeStruct((rows, lanes), io_dtype),
        grid_spec=pltpu.PrefetchScalarGridSpec(
            num_scalar_prefetch=1,
            grid=grid,
            in_specs=[pl.BlockSpec((tm, lanes), lambda i, inv_b: (i, 0))],
            out_specs=pl.BlockSpec((tm, lanes), lambda i, inv_b: (i, 0)),
        ),
        compiler_params=pltpu.CompilerParams(
            dimension_semantics=("parallel",)),
    )(inv_beta, x2d)

    out_flat = out.reshape((-1,))
    if pad:
        out_flat = out_flat[:n]
    return out_flat.reshape(orig_shape).astype(orig_dtype)


def laplace_density_ref(sdf, beta_param, beta_min, beta=None):
    """Pure-JAX reference mirroring the PyTorch module."""
    if beta is None:
        beta = jnp.abs(beta_param) + beta_min
    alpha = 1.0 / beta
    return alpha * (0.5 + 0.5 * jnp.sign(sdf) * jnp.expm1(-jnp.abs(sdf) / beta))


if __name__ == "__main__":
    key = jax.random.PRNGKey(0)

    # Deterministic parameter init (module __init__: beta = init_val * ones(1)).
    init_val = 0.1
    beta_min_val = 1e-4
    beta_param = init_val * jnp.ones((1,), dtype=jnp.float32)
    beta_min = beta_min_val * jnp.ones((1,), dtype=jnp.float32)

    # [num_points, 1] as produced by an SDF field (num_points = rays * samples).
    sdf = jax.random.normal(key, (2 * 8 * 16, 1), dtype=jnp.float32) * 0.5

    out = jax.block_until_ready(laplace_density(sdf, beta_param, beta_min))
    ref = laplace_density_ref(sdf, beta_param, beta_min)
    assert out.shape == sdf.shape and out.dtype == sdf.dtype
    assert jnp.allclose(out, ref, atol=1e-5, rtol=1e-5)

    # Explicit-beta override path.
    out2 = jax.block_until_ready(
        laplace_density(sdf, beta_param, beta_min, beta=jnp.float32(0.05)))
    ref2 = laplace_density_ref(sdf, beta_param, beta_min, beta=jnp.float32(0.05))
    assert jnp.allclose(out2, ref2, atol=1e-5, rtol=1e-5)

    # Flat size a multiple of the lane width -> no pad / no slice path.
    sdf3 = jax.random.normal(jax.random.PRNGKey(1), (4, 1024, 1), jnp.float32)
    out3 = jax.block_until_ready(laplace_density(sdf3, beta_param, beta_min))
    ref3 = laplace_density_ref(sdf3, beta_param, beta_min)
    assert out3.shape == sdf3.shape
    assert jnp.allclose(out3, ref3, atol=1e-5, rtol=1e-5)

    # Ragged size (exercises the <128-element pad path) and negative SDFs.
    sdf4 = jax.random.normal(jax.random.PRNGKey(2), (257, 1), jnp.float32)
    out4 = jax.block_until_ready(laplace_density(sdf4, beta_param, beta_min))
    ref4 = laplace_density_ref(sdf4, beta_param, beta_min)
    assert out4.shape == sdf4.shape
    assert jnp.allclose(out4, ref4, atol=1e-5, rtol=1e-5)

    # bf16 I/O path (compute stays in f32 inside the kernel).
    sdf5 = sdf.astype(jnp.bfloat16)
    out5 = jax.block_until_ready(laplace_density(sdf5, beta_param, beta_min))
    ref5 = laplace_density_ref(sdf5.astype(jnp.float32), beta_param, beta_min)
    assert out5.dtype == jnp.bfloat16 and out5.shape == sdf5.shape
    assert jnp.allclose(out5.astype(jnp.float32), ref5, atol=2e-2, rtol=2e-2)

    print("KERNEL_OK")
</pallas_src>

<mosaic_0001>
module attributes {stable_mosaic.version = 11 : i64} {
  func.func @_laplace_density_kernel(%arg0: i32, %arg1: memref<1xf32, #tpu.memory_space<smem>>, %arg2: memref<2x128xf32, #tpu.memory_space<vmem>>, %arg3: memref<2x128xf32, #tpu.memory_space<vmem>>) attributes {dimension_semantics = [#tpu.dimension_semantics<parallel>], iteration_bounds = array<i64: 1>, scalar_prefetch = 1 : i64, scratch_operands = 0 : i64, tpu.core_type = #tpu.core_type<tc>, window_params = [{transform_indices = @transform_0, window_bounds = array<i64: 2, 128>}, {transform_indices = @transform_1, window_bounds = array<i64: 2, 128>}]} {
    %c0 = arith.constant 0 : index
    %0 = memref.load %arg1[%c0] : memref<1xf32, #tpu.memory_space<smem>>
    %c0_0 = arith.constant 0 : index
    %c0_1 = arith.constant 0 : index
    %1 = vector.load %arg2[%c0_0, %c0_1] : memref<2x128xf32, #tpu.memory_space<vmem>>, vector<2x128xf32>
    %2 = math.absf %1 : vector<2x128xf32>
    %cst = arith.constant 0.000000e+00 : f32
    %3 = vector.broadcast %cst : f32 to vector<2x128xf32>
    %4 = arith.subf %3, %2 : vector<2x128xf32>
    %5 = vector.broadcast %0 : f32 to vector<2x128xf32>
    %6 = arith.mulf %4, %5 : vector<2x128xf32>
    %7 = math.exp %6 : vector<2x128xf32>
    %cst_2 = arith.constant 5.000000e-01 : f32
    %8 = vector.broadcast %cst_2 : f32 to vector<2x128xf32>
    %9 = arith.mulf %8, %7 : vector<2x128xf32>
    %cst_3 = arith.constant 0.000000e+00 : f32
    %10 = vector.broadcast %cst_3 : f32 to vector<2x128xf32>
    %11 = arith.cmpf oge, %1, %10 : vector<2x128xf32>
    %cst_4 = arith.constant 1.000000e+00 : f32
    %12 = vector.broadcast %cst_4 : f32 to vector<2x128xf32>
    %13 = arith.subf %12, %9 : vector<2x128xf32>
    %14 = arith.select %11, %9, %13 : vector<2x128xi1>, vector<2x128xf32>
    %15 = vector.broadcast %0 : f32 to vector<2x128xf32>
    %16 = arith.mulf %15, %14 : vector<2x128xf32>
    %c0_5 = arith.constant 0 : index
    %c0_6 = arith.constant 0 : index
    %17 = vector.load %arg3[%c0_5, %c0_6] : memref<2x128xf32, #tpu.memory_space<vmem>>, vector<2x128xf32>
    tpu.vector_store %arg3[%c0_5, %c0_6], %16 {strides = array<i32>} : memref<2x128xf32, #tpu.memory_space<vmem>>, vector<2x128xf32>,
    return
  }
  func.func @transform_0(%arg0: i32, %arg1: memref<1xf32, #tpu.memory_space<smem>>) -> (i32, i32) {
    %c0_i32 = arith.constant 0 : i32
    %c0_i32_0 = arith.constant 0 : i32
    return %arg0, %c0_i32 : i32, i32
  }
  func.func @transform_1(%arg0: i32, %arg1: memref<1xf32, #tpu.memory_space<smem>>) -> (i32, i32) {
    %c0_i32 = arith.constant 0 : i32
    %c0_i32_0 = arith.constant 0 : i32
    return %arg0, %c0_i32 : i32, i32
  }
}

</mosaic_0001>

<llo_original>
// kernel: tpu_custom_call.1
$region0: #{tpu_custom_call.1}
  #allocation0 [shape = 'u32[]', space=smem, size = 0x4, offset = 0x4, fixed_abs, tag = 'smem constant byte address 0x4 - core index']
  #allocation1 [shape = 'u32[144,128]{1,0:T(1,128)}', space=vmem, size = 0x12000, scoped, tag = 'internal scratch']
  #allocation2 [shape = 's32[1]{0}', space=sflag, size = 0x4, scoped, tag = 'scoped memory for tpu_custom_call.1']
  #allocation3 [shape = 'f32[1]{0:T(128)S(6)}', space=smem, size = 0x200, scoped, tag = 'prefetched SMEM operand 0']
  %s0 = inlined_call_operand.<no memory space> [shape: f32[1], index: 0, kind: input, shape index: {}]
  %s1 = inlined_call_operand.vmem [shape: f32[2,128], index: 1, kind: input, shape index: {}]
  %s2 = inlined_call_operand.hbm [shape: f32[2,128], index: 2, kind: output, shape index: {}]
  %s3 = sld [smem:[#allocation0]]
  $region14: #{tpu_custom_call.1} parent=0
    _
  %s5 = ssub.s32 1, %s3
  %s6 = scalar_select 0, %s5, %s3
  %7 = sst [smem:[#allocation3]] %s0
  $region1: #{tpu_custom_call.1} parent=0
    #allocation4 [shape = 'u8[1024]{0}', space=vmem, size = 0x400, scoped, tag = 'output window, operand 0, single buffered']
    #allocation5 [shape = 's32[1]{0}', space=sflag, size = 0x4, scoped, tag = 'scoped memory for tpu_custom_call.1']
    %8 = vsyncpa [#allocation5], 0
    // Predicated region
    $region2: #{tpu_custom_call.1} parent=1 // pred_check
      _
    $region3: #{tpu_custom_call.1} parent=1 // pred_check_branch
      %10 = sbr.rel (0) target = $region5
    $region4: #{tpu_custom_call.1} parent=1 // pred_region
      _
    $region5: #{tpu_custom_call.1} parent=1 // pred_fallthru
      _
    %s11 = sld [smem:[#allocation3]]
    %v12 = vld [vmem:[%s1] sm:$0x3]
    %v13 = vand.u32 2147483647, %v12
    %v14 = vsub.f32 0.0, %v13
    %v15 = vstv %s11
    %v16 = vmul.f32 %v14, %v15
    %v17 = vmul.f32 %v16, 1.442695
    %v18 = vpow.pop %v17
    %v19 = vmul.f32 %v18, 0.5
    %vm20 = vcmp.ge.f32.partialorder %v12, 0.0
    %v21 = vsub.f32 1.0, %v19
    %v22 = vsel %vm20, %v19, %v21
    %v23 = vmul.f32 %v15, %v22
    %24 = vst [vmem:[#allocation4] sm:$0x3] %v23
    // Predicated region
    $region6: #{tpu_custom_call.1} parent=1 // pred_check
      _
    $region7: #{tpu_custom_call.1} parent=1 // pred_check_branch
      %26 = sbr.rel (0) target = $region9
    $region8: #{tpu_custom_call.1} parent=1 // pred_region
      %s28 = ssub.s32 32, 32
      %29 = vsyncadd [#allocation5], %s28
      %s31 = sshll.u32 [#allocation4], 4
      %s32 = int_to_ptr.vmem [resolvable:$true] %s31
      %34 = dma.vmem_to_hbm [thread:$0]  %s32, 32, %s2, [#allocation5]
    $region9: #{tpu_custom_call.1} parent=1 // pred_fallthru
      _
    // Predicated region
    $region10: #{tpu_custom_call.1} parent=1 // pred_check
      _
    $region11: #{tpu_custom_call.1} parent=1 // pred_check_branch
      %36 = sbr.rel (0) target = $region13
    $region12: #{tpu_custom_call.1} parent=1 // pred_region
      %37 = dma.done [#allocation5], 32
    $region13: #{tpu_custom_call.1} parent=1 // pred_fallthru
      _
    %38 = vsyncpa [#allocation5], 1

</llo_original>
